<compile_context>
chip_gen: v5e
topology: v5e:2x2
jax: 0.10.0
libtpu: 0.0.40
codegen_flags: <defaults>
</compile_context>

<pallas_src>
import functools

import jax
import jax.numpy as jnp
from jax.experimental import pallas as pl
from jax.experimental.pallas import tpu as pltpu

_EPS = 1e-5                       # nn.BatchNorm2d default eps
_LANES = 128
_PIXEL_TILE = 1024                # pixels (lanes) per grid step for the conv kernels
_RELU_ROWS = 4096                 # (4096, 128) f32 = 2 MiB blocks for the identity path
_VMEM_LIMIT = 64 * 1024 * 1024    # above the 16/32 MiB scoped defaults; fits all gens


# ---------------------------------------------------------------------------
# Pallas kernels
# ---------------------------------------------------------------------------
def _conv_stats_kernel(x_ref, wt_ref, sum_ref, sumsq_ref, *, tp, p_total, compute_dtype):
    """Pass 1: y = Wt @ x_tile on the MXU; accumulate per-channel sum / sum-of-squares.

    x_ref:   (1, Cin, tp) activation tile (channels on sublanes, pixels on lanes).
    wt_ref:  (Cout, Cin)  weight in PyTorch (out, in) layout -> no transposes anywhere.
    sum_ref/sumsq_ref: (Cout, 1) resident f32 accumulators (constant block index).
    """
    b = pl.program_id(0)
    t = pl.program_id(1)

    @pl.when(jnp.logical_and(b == 0, t == 0))
    def _():
        sum_ref[...] = jnp.zeros_like(sum_ref)
        sumsq_ref[...] = jnp.zeros_like(sumsq_ref)

    xb = x_ref[0].astype(compute_dtype)                                 # (Cin, tp)
    y = jnp.dot(wt_ref[...], xb, preferred_element_type=jnp.float32)    # (Cout, tp) f32

    # Mask lanes of the final partial pixel tile so statistics stay exact without
    # padding the activation in HBM.
    valid = p_total - t * tp
    lane = jax.lax.broadcasted_iota(jnp.int32, (1, tp), 1)
    ym = jnp.where(lane < valid, y, 0.0)

    sum_ref[...] += jnp.sum(ym, axis=1, keepdims=True)
    sumsq_ref[...] += jnp.sum(ym * ym, axis=1, keepdims=True)


def _conv_apply_kernel(x_ref, wt_ref, scale_ref, shift_ref, o_ref, *,
                       apply_relu, compute_dtype):
    """Pass 2: recompute the tile matmul, apply folded BN (scale, shift), optional ReLU."""
    xb = x_ref[0].astype(compute_dtype)
    y = jnp.dot(wt_ref[...], xb, preferred_element_type=jnp.float32)    # (Cout, tp)
    y = y * scale_ref[...] + shift_ref[...]                             # one f32 FMA
    if apply_relu:
        y = jnp.maximum(y, 0.0)
    o_ref[0] = y.astype(o_ref.dtype)


def _relu_kernel(x_ref, o_ref):
    o_ref[...] = jnp.maximum(x_ref[...], 0.0)


# ---------------------------------------------------------------------------
# Wrappers
# ---------------------------------------------------------------------------
def conv1x1_bn_act_nchw(x_ncp, wt, gamma, beta, *, apply_relu, eps=_EPS,
                        matmul_dtype=jnp.bfloat16, out_dtype=jnp.float32,
                        pixel_tile=_PIXEL_TILE):
    """Fused 1x1 conv + training-mode BatchNorm + ReLU, NCHW-native.

    x_ncp: (N, Cin, P) activation (P = H*W after any striding), any float dtype (an f32
           input is cast to `matmul_dtype` inside the kernel to avoid an extra HBM pass).
    wt:    (Cout, Cin) weight in PyTorch conv layout.  The conv bias is intentionally
           omitted: train-mode BN's mean subtraction cancels it exactly.
    """
    N, Cin, P = x_ncp.shape
    Cout = wt.shape[0]
    tp = P if P <= pixel_tile else pixel_tile       # lane tile; full-dim when P is small
    grid = (N, pl.cdiv(P, tp))

    wt = wt.astype(matmul_dtype)
    x_spec = pl.BlockSpec((1, Cin, tp), lambda b, t: (b, 0, t))
    # Constant block index -> Pallas DMAs the weight once; with bf16 even a 1024x2048
    # weight is <=8 MiB double-buffered, so no pl.Buffered(1) override is needed.
    w_spec = pl.BlockSpec((Cout, Cin), lambda b, t: (0, 0))
    c_spec = pl.BlockSpec((Cout, 1), lambda b, t: (0, 0))

    x_bytes = int(x_ncp.size) * x_ncp.dtype.itemsize
    w_bytes = int(wt.size) * jnp.dtype(matmul_dtype).itemsize
    flops = 2 * N * P * Cin * Cout

    # Pass 1: global per-channel sum / sum-of-squares of the pre-BN conv output.
    # Both grid axes are "arbitrary" (global reduction into resident (Cout,1) outputs).
    # NOTE: no per-core partial-stats split here — at this conv's arithmetic intensity
    # the pass is HBM-bound on v5e/v6e and a single v7x TensorCore already saturates
    # HBM at real ResNet sizes, so a dual-core split buys <10%.
    sum_y, sumsq_y = pl.pallas_call(
        functools.partial(_conv_stats_kernel, tp=tp, p_total=P,
                          compute_dtype=matmul_dtype),
        out_shape=(jax.ShapeDtypeStruct((Cout, 1), jnp.float32),
                   jax.ShapeDtypeStruct((Cout, 1), jnp.float32)),
        grid=grid,
        in_specs=[x_spec, w_spec],
        out_specs=(c_spec, c_spec),
        compiler_params=pltpu.CompilerParams(
            dimension_semantics=("arbitrary", "arbitrary"),
            vmem_limit_bytes=_VMEM_LIMIT),
        cost_estimate=pl.CostEstimate(flops=flops, transcendentals=0,
                                      bytes_accessed=x_bytes + w_bytes + 8 * Cout),
    )(x_ncp, wt)

    # Folded BN parameters, computed once between passes (tiny (Cout,1) XLA op).
    # var is clamped >= 0 against one-pass E[y^2]-E[y]^2 cancellation.
    inv_m = 1.0 / float(N * P)
    mean = sum_y * inv_m
    var = jnp.maximum(sumsq_y * inv_m - mean * mean, 0.0)
    scale = gamma.astype(jnp.float32).reshape(Cout, 1) * jax.lax.rsqrt(var + eps)
    shift = beta.astype(jnp.float32).reshape(Cout, 1) - mean * scale

    # Pass 2: matmul + scale/shift (+ ReLU).  Tiles are independent -> both axes
    # "parallel" so v7x's two TensorCores split the work; lane-dense NCHW output.
    out = pl.pallas_call(
        functools.partial(_conv_apply_kernel, apply_relu=apply_relu,
                          compute_dtype=matmul_dtype),
        out_shape=jax.ShapeDtypeStruct((N, Cout, P), out_dtype),
        grid=grid,
        in_specs=[x_spec, w_spec, c_spec, c_spec],
        out_specs=pl.BlockSpec((1, Cout, tp), lambda b, t: (b, 0, t)),
        compiler_params=pltpu.CompilerParams(
            dimension_semantics=("parallel", "parallel"),
            vmem_limit_bytes=_VMEM_LIMIT),
        cost_estimate=pl.CostEstimate(
            flops=flops, transcendentals=0,
            bytes_accessed=x_bytes + w_bytes
            + N * P * Cout * jnp.dtype(out_dtype).itemsize),
    )(x_ncp, wt, scale, shift)
    return out


def relu_elementwise(x):
    """Tiled, lane-dense elementwise ReLU on an arbitrary array (identity shortcut)."""
    total = int(x.size)
    flat = x.reshape(-1)
    quantum = _LANES * 8
    pad = (-total) % quantum
    if pad:                                   # skipped when already lane/sublane aligned
        flat = jnp.pad(flat, (0, pad))
    rows = (total + pad) // _LANES            # multiple of 8
    arr = flat.reshape(rows, _LANES)
    tm = min(_RELU_ROWS, rows)                # 2 MiB f32 blocks amortize per-step overhead
    out = pl.pallas_call(
        _relu_kernel,
        out_shape=jax.ShapeDtypeStruct((rows, _LANES), x.dtype),
        grid=(pl.cdiv(rows, tm),),
        in_specs=[pl.BlockSpec((tm, _LANES), lambda i: (i, 0))],
        out_specs=pl.BlockSpec((tm, _LANES), lambda i: (i, 0)),
        compiler_params=pltpu.CompilerParams(
            dimension_semantics=("parallel",),
            vmem_limit_bytes=_VMEM_LIMIT),
    )(arr)
    out = out.reshape(-1)
    if pad:
        out = out[:total]
    return out.reshape(x.shape)


# ---------------------------------------------------------------------------
# Bottleneckblock
# ---------------------------------------------------------------------------
def init_params(key, dep_in, dep_mid, has_shortcut):
    exp = 4
    ks = iter(jax.random.split(key, 16))

    def nrm(shape, scale=0.1):
        return scale * jax.random.normal(next(ks), shape, jnp.float32)

    # layer1/2/3 parameters are kept for parity with the PyTorch module, but the fx
    # chain is dead work in the reference forward (never added to the output), so
    # bottleneck_forward does not consume them (same result as jit-DCE would give).
    p = {
        "w1": nrm((dep_mid, dep_in)), "b1": nrm((dep_mid,)),
        "g1": 1.0 + nrm((dep_mid,)), "be1": nrm((dep_mid,)),
        "w2": nrm((dep_mid, dep_mid, 3, 3)), "b2": nrm((dep_mid,)),
        "g2": 1.0 + nrm((dep_mid,)), "be2": nrm((dep_mid,)),
        "w3": nrm((dep_mid * exp, dep_mid)), "b3": nrm((dep_mid * exp,)),
        "g3": 1.0 + nrm((dep_mid * exp,)), "be3": nrm((dep_mid * exp,)),
    }
    if has_shortcut:
        p.update({
            # PyTorch Conv2d 1x1 weight layout: (out_channels, in_channels).
            "ws": nrm((dep_mid * exp, dep_in)), "bs": nrm((dep_mid * exp,)),
            "gs": 1.0 + nrm((dep_mid * exp,)), "bes": nrm((dep_mid * exp,)),
        })
    return p


def bottleneck_forward(x_nchw, params, stride, has_shortcut, matmul_dtype=jnp.bfloat16):
    """Output-equivalent to Bottleneckblock.forward: returns ReLU(shortcut(x)).

    fx = layer3(layer2(layer1(x))) never reaches the output (no residual add in the
    source), so it is elided — identical result, >90% less compute / HBM traffic.
    """
    out_dtype = x_nchw.dtype
    if has_shortcut:
        # Projection shortcut: 1x1 conv(stride) + train-mode BN + end_rule ReLU.
        # Stride-2 subsampling is done in NCHW first and fused with the bf16 cast; the
        # Pallas kernels compute Wt @ X (channels on sublanes, pixels on lanes) so both
        # input and output stay NCHW — no layout transposes at all.
        xs = x_nchw
        if stride != 1:
            xs = xs[:, :, ::stride, ::stride]
            if xs.dtype != jnp.dtype(matmul_dtype):
                xs = xs.astype(matmul_dtype)        # fused with the strided copy
        # (for stride == 1 the cast happens in-kernel: one f32 read beats an extra
        #  cast pass through HBM)
        N, Cin, Hs, Ws = xs.shape
        # params["bs"] (conv bias) is intentionally unused: BN mean subtraction cancels it.
        out = conv1x1_bn_act_nchw(
            xs.reshape(N, Cin, Hs * Ws), params["ws"], params["gs"], params["bes"],
            apply_relu=True, matmul_dtype=matmul_dtype, out_dtype=out_dtype)
        return out.reshape(N, -1, Hs, Ws)
    # Identity shortcut: output is just end_rule ReLU(x); elementwise, stays in NCHW.
    return relu_elementwise(x_nchw)


if __name__ == "__main__":
    key = jax.random.PRNGKey(0)
    kx1, kp1, kx2, kp2 = jax.random.split(key, 4)

    # ---- Case 1: projection shortcut (stride=2, dep_in != dep_mid*4) ----
    dep_in, dep_mid, stride = 16, 8, 2
    x = jax.random.normal(kx1, (2, dep_in, 8, 8), jnp.float32)
    params = init_params(kp1, dep_in, dep_mid, has_shortcut=True)

    # pure-JAX reference: ReLU(BN_train(Conv1x1_stride(x) + bias))
    xs_ref = x[:, :, ::stride, ::stride]
    y = jnp.einsum("nchw,oc->nohw", xs_ref, params["ws"]) + params["bs"][None, :, None, None]
    mu = y.mean(axis=(0, 2, 3), keepdims=True)
    var = ((y - mu) ** 2).mean(axis=(0, 2, 3), keepdims=True)
    ref = jnp.maximum((y - mu) / jnp.sqrt(var + _EPS)
                      * params["gs"][None, :, None, None]
                      + params["bes"][None, :, None, None], 0.0)

    # exact-semantics check with f32 MXU operands
    fwd_f32 = jax.jit(functools.partial(bottleneck_forward, stride=stride,
                                        has_shortcut=True, matmul_dtype=jnp.float32))
    out_f32 = fwd_f32(x, params)
    jax.block_until_ready(out_f32)
    assert out_f32.shape == (2, dep_mid * 4, 4, 4), out_f32.shape
    assert jnp.allclose(out_f32, ref, atol=2e-4, rtol=2e-4), \
        float(jnp.max(jnp.abs(out_f32 - ref)))

    # production path: bf16 MXU operands (f32 stats/accumulation) -> looser tolerance
    fwd_bf16 = jax.jit(functools.partial(bottleneck_forward, stride=stride,
                                         has_shortcut=True))
    out_bf16 = fwd_bf16(x, params)
    jax.block_until_ready(out_bf16)
    assert out_bf16.shape == (2, dep_mid * 4, 4, 4)
    assert jnp.allclose(out_bf16, ref, atol=1e-1, rtol=1e-1), \
        float(jnp.max(jnp.abs(out_bf16 - ref)))

    # ---- Case 2: identity shortcut (stride=1, dep_in == dep_mid*4) -> ReLU(x) ----
    dep_in2, dep_mid2 = 32, 8
    x2 = jax.random.normal(kx2, (2, dep_in2, 8, 8), jnp.float32)
    params2 = init_params(kp2, dep_in2, dep_mid2, has_shortcut=False)
    fwd_id = jax.jit(functools.partial(bottleneck_forward, stride=1, has_shortcut=False))
    out2 = fwd_id(x2, params2)
    jax.block_until_ready(out2)
    assert out2.shape == x2.shape
    assert jnp.allclose(out2, jnp.maximum(x2, 0.0), atol=1e-6)

    print("KERNEL_OK")
</pallas_src>

<mosaic_0001>
module attributes {stable_mosaic.version = 11 : i64} {
  func.func @_conv_apply_kernel(%arg0: i32, %arg1: i32, %arg2: memref<1x16x16xf32, #tpu.memory_space<vmem>>, %arg3: memref<32x16xf32, #tpu.memory_space<vmem>>, %arg4: memref<32x1xf32, #tpu.memory_space<vmem>>, %arg5: memref<32x1xf32, #tpu.memory_space<vmem>>, %arg6: memref<1x32x16xf32, #tpu.memory_space<vmem>>) attributes {dimension_semantics = [#tpu.dimension_semantics<parallel>, #tpu.dimension_semantics<parallel>], iteration_bounds = array<i64: 2, 1>, scalar_prefetch = 0 : i64, scratch_operands = 0 : i64, tpu.core_type = #tpu.core_type<tc>, window_params = [{transform_indices = @transform_0, window_bounds = array<i64: 1, 16, 16>}, {pipeline_mode = #tpu.pipeline_mode<synchronous>, transform_indices = @transform_1, window_bounds = array<i64: 32, 16>}, {pipeline_mode = #tpu.pipeline_mode<synchronous>, transform_indices = @transform_2, window_bounds = array<i64: 32, 1>}, {pipeline_mode = #tpu.pipeline_mode<synchronous>, transform_indices = @transform_3, window_bounds = array<i64: 32, 1>}, {transform_indices = @transform_4, window_bounds = array<i64: 1, 32, 16>}]} {
    %c0 = arith.constant 0 : index
    %c0_0 = arith.constant 0 : index
    %c0_1 = arith.constant 0 : index
    %0 = vector.load %arg2[%c0, %c0_0, %c0_1] : memref<1x16x16xf32, #tpu.memory_space<vmem>>, vector<1x16x16xf32>
    %1 = vector.shape_cast %0 : vector<1x16x16xf32> to vector<16x16xf32>
    %c0_2 = arith.constant 0 : index
    %c0_3 = arith.constant 0 : index
    %2 = vector.load %arg3[%c0_2, %c0_3] : memref<32x16xf32, #tpu.memory_space<vmem>>, vector<32x16xf32>
    %cst = arith.constant dense<0.000000e+00> : vector<32x16xf32>
    %3 = tpu.matmul %2, %1, %cst {dimension_numbers = #tpu.dot_dimension_numbers<[1], [0], [0], [1], [0, 0, 1, 1], [], []>} : vector<32x16xf32>, vector<16x16xf32>, vector<32x16xf32> -> vector<32x16xf32>
    %c0_4 = arith.constant 0 : index
    %c0_5 = arith.constant 0 : index
    %4 = vector.load %arg4[%c0_4, %c0_5] : memref<32x1xf32, #tpu.memory_space<vmem>>, vector<32x1xf32>
    %5 = vector.broadcast %4 : vector<32x1xf32> to vector<32x16xf32>
    %6 = arith.mulf %3, %5 : vector<32x16xf32>
    %c0_6 = arith.constant 0 : index
    %c0_7 = arith.constant 0 : index
    %7 = vector.load %arg5[%c0_6, %c0_7] : memref<32x1xf32, #tpu.memory_space<vmem>>, vector<32x1xf32>
    %8 = vector.broadcast %7 : vector<32x1xf32> to vector<32x16xf32>
    %9 = arith.addf %6, %8 : vector<32x16xf32>
    %cst_8 = arith.constant 0.000000e+00 : f32
    %10 = vector.broadcast %cst_8 : f32 to vector<32x16xf32>
    %11 = arith.maximumf %9, %10 : vector<32x16xf32>
    %c0_9 = arith.constant 0 : index
    %c0_10 = arith.constant 0 : index
    %c0_11 = arith.constant 0 : index
    %12 = vector.load %arg6[%c0_9, %c0_10, %c0_11] : memref<1x32x16xf32, #tpu.memory_space<vmem>>, vector<1x32x16xf32>
    %13 = vector.shape_cast %12 : vector<1x32x16xf32> to vector<32x16xf32>
    %14 = vector.shape_cast %11 : vector<32x16xf32> to vector<1x32x16xf32>
    tpu.vector_store %arg6[%c0_9, %c0_10, %c0_11], %14 {strides = array<i32>} : memref<1x32x16xf32, #tpu.memory_space<vmem>>, vector<1x32x16xf32>,
    return
  }
  func.func @transform_0(%arg0: i32, %arg1: i32) -> (i32, i32, i32) {
    %c0_i32 = arith.constant 0 : i32
    %c0_i32_0 = arith.constant 0 : i32
    return %arg0, %c0_i32, %arg1 : i32, i32, i32
  }
  func.func @transform_1(%arg0: i32, %arg1: i32) -> (i32, i32) {
    %c0_i32 = arith.constant 0 : i32
    %c0_i32_0 = arith.constant 0 : i32
    %c0_i32_1 = arith.constant 0 : i32
    return %c0_i32, %c0_i32_0 : i32, i32
  }
  func.func @transform_2(%arg0: i32, %arg1: i32) -> (i32, i32) {
    %c0_i32 = arith.constant 0 : i32
    %c0_i32_0 = arith.constant 0 : i32
    %c0_i32_1 = arith.constant 0 : i32
    return %c0_i32, %c0_i32_0 : i32, i32
  }
  func.func @transform_3(%arg0: i32, %arg1: i32) -> (i32, i32) {
    %c0_i32 = arith.constant 0 : i32
    %c0_i32_0 = arith.constant 0 : i32
    %c0_i32_1 = arith.constant 0 : i32
    return %c0_i32, %c0_i32_0 : i32, i32
  }
  func.func @transform_4(%arg0: i32, %arg1: i32) -> (i32, i32, i32) {
    %c0_i32 = arith.constant 0 : i32
    %c0_i32_0 = arith.constant 0 : i32
    return %arg0, %c0_i32, %arg1 : i32, i32, i32
  }
}

module attributes {stable_mosaic.version = 11 : i64} {
  func.func @_conv_stats_kernel(%arg0: i32, %arg1: i32, %arg2: memref<1x16x16xf32, #tpu.memory_space<vmem>>, %arg3: memref<32x16xf32, #tpu.memory_space<vmem>>, %arg4: memref<32x1xf32, #tpu.memory_space<vmem>>, %arg5: memref<32x1xf32, #tpu.memory_space<vmem>>) attributes {dimension_semantics = [#tpu.dimension_semantics<arbitrary>, #tpu.dimension_semantics<arbitrary>], iteration_bounds = array<i64: 2, 1>, scalar_prefetch = 0 : i64, scratch_operands = 0 : i64, tpu.core_type = #tpu.core_type<tc>, window_params = [{transform_indices = @transform_0, window_bounds = array<i64: 1, 16, 16>}, {pipeline_mode = #tpu.pipeline_mode<synchronous>, transform_indices = @transform_1, window_bounds = array<i64: 32, 16>}, {pipeline_mode = #tpu.pipeline_mode<synchronous>, transform_indices = @transform_2, window_bounds = array<i64: 32, 1>}, {pipeline_mode = #tpu.pipeline_mode<synchronous>, transform_indices = @transform_3, window_bounds = array<i64: 32, 1>}]} {
    %c0_i32 = arith.constant 0 : i32
    %0 = arith.cmpi eq, %arg0, %c0_i32 : i32
    %c0_i32_0 = arith.constant 0 : i32
    %1 = arith.cmpi eq, %arg1, %c0_i32_0 : i32
    %2 = arith.andi %0, %1 : i1
    %3 = arith.extui %2 : i1 to i32
    %c0_i32_1 = arith.constant 0 : i32
    %4 = arith.cmpi ne, %3, %c0_i32_1 : i32
    scf.if %4 {
      %cst_18 = arith.constant 0.000000e+00 : f32
      %29 = vector.broadcast %cst_18 : f32 to vector<32x1xf32>
      %c0_19 = arith.constant 0 : index
      %c0_20 = arith.constant 0 : index
      %30 = vector.load %arg4[%c0_19, %c0_20] : memref<32x1xf32, #tpu.memory_space<vmem>>, vector<32x1xf32>
      tpu.vector_store %arg4[%c0_19, %c0_20], %29 {strides = array<i32>} : memref<32x1xf32, #tpu.memory_space<vmem>>, vector<32x1xf32>,
      %cst_21 = arith.constant 0.000000e+00 : f32
      %31 = vector.broadcast %cst_21 : f32 to vector<32x1xf32>
      %c0_22 = arith.constant 0 : index
      %c0_23 = arith.constant 0 : index
      %32 = vector.load %arg5[%c0_22, %c0_23] : memref<32x1xf32, #tpu.memory_space<vmem>>, vector<32x1xf32>
      tpu.vector_store %arg5[%c0_22, %c0_23], %31 {strides = array<i32>} : memref<32x1xf32, #tpu.memory_space<vmem>>, vector<32x1xf32>,
    } else {
    }
    %c0 = arith.constant 0 : index
    %c0_2 = arith.constant 0 : index
    %c0_3 = arith.constant 0 : index
    %5 = vector.load %arg2[%c0, %c0_2, %c0_3] : memref<1x16x16xf32, #tpu.memory_space<vmem>>, vector<1x16x16xf32>
    %6 = vector.shape_cast %5 : vector<1x16x16xf32> to vector<16x16xf32>
    %c0_4 = arith.constant 0 : index
    %c0_5 = arith.constant 0 : index
    %7 = vector.load %arg3[%c0_4, %c0_5] : memref<32x16xf32, #tpu.memory_space<vmem>>, vector<32x16xf32>
    %cst = arith.constant dense<0.000000e+00> : vector<32x16xf32>
    %8 = tpu.matmul %7, %6, %cst {dimension_numbers = #tpu.dot_dimension_numbers<[1], [0], [0], [1], [0, 0, 1, 1], [], []>} : vector<32x16xf32>, vector<16x16xf32>, vector<32x16xf32> -> vector<32x16xf32>
    %c16_i32 = arith.constant 16 : i32
    %9 = arith.muli %arg1, %c16_i32 : i32
    %c16_i32_6 = arith.constant 16 : i32
    %10 = arith.subi %c16_i32_6, %9 : i32
    %11 = tpu.iota {dimensions = array<i32: 1>} : vector<1x16xi32>
    %12 = vector.broadcast %10 : i32 to vector<1x16xi32>
    %13 = arith.cmpi slt, %11, %12 : vector<1x16xi32>
    %cst_7 = arith.constant 0.000000e+00 : f32
    %14 = vector.shape_cast %13 : vector<1x16xi1> to vector<1x16xi1>
    %15 = vector.broadcast %14 : vector<1x16xi1> to vector<32x16xi1>
    %16 = vector.broadcast %cst_7 : f32 to vector<32x16xf32>
    %17 = arith.select %15, %8, %16 : vector<32x16xi1>, vector<32x16xf32>
    %c0_8 = arith.constant 0 : index
    %c0_9 = arith.constant 0 : index
    %18 = vector.load %arg4[%c0_8, %c0_9] : memref<32x1xf32, #tpu.memory_space<vmem>>, vector<32x1xf32>
    %cst_10 = arith.constant dense<0.000000e+00> : vector<32xf32>
    %19 = vector.multi_reduction <add>, %17, %cst_10 [1] : vector<32x16xf32> to vector<32xf32>
    %20 = vector.shape_cast %19 : vector<32xf32> to vector<32x1xf32>
    %21 = arith.addf %18, %20 : vector<32x1xf32>
    %c0_11 = arith.constant 0 : index
    %c0_12 = arith.constant 0 : index
    %22 = vector.load %arg4[%c0_11, %c0_12] : memref<32x1xf32, #tpu.memory_space<vmem>>, vector<32x1xf32>
    tpu.vector_store %arg4[%c0_11, %c0_12], %21 {strides = array<i32>} : memref<32x1xf32, #tpu.memory_space<vmem>>, vector<32x1xf32>,
    %c0_13 = arith.constant 0 : index
    %c0_14 = arith.constant 0 : index
    %23 = vector.load %arg5[%c0_13, %c0_14] : memref<32x1xf32, #tpu.memory_space<vmem>>, vector<32x1xf32>
    %24 = arith.mulf %17, %17 : vector<32x16xf32>
    %cst_15 = arith.constant dense<0.000000e+00> : vector<32xf32>
    %25 = vector.multi_reduction <add>, %24, %cst_15 [1] : vector<32x16xf32> to vector<32xf32>
    %26 = vector.shape_cast %25 : vector<32xf32> to vector<32x1xf32>
    %27 = arith.addf %23, %26 : vector<32x1xf32>
    %c0_16 = arith.constant 0 : index
    %c0_17 = arith.constant 0 : index
    %28 = vector.load %arg5[%c0_16, %c0_17] : memref<32x1xf32, #tpu.memory_space<vmem>>, vector<32x1xf32>
    tpu.vector_store %arg5[%c0_16, %c0_17], %27 {strides = array<i32>} : memref<32x1xf32, #tpu.memory_space<vmem>>, vector<32x1xf32>,
    return
  }
  func.func @transform_0(%arg0: i32, %arg1: i32) -> (i32, i32, i32) {
    %c0_i32 = arith.constant 0 : i32
    %c0_i32_0 = arith.constant 0 : i32
    return %arg0, %c0_i32, %arg1 : i32, i32, i32
  }
  func.func @transform_1(%arg0: i32, %arg1: i32) -> (i32, i32) {
    %c0_i32 = arith.constant 0 : i32
    %c0_i32_0 = arith.constant 0 : i32
    %c0_i32_1 = arith.constant 0 : i32
    return %c0_i32, %c0_i32_0 : i32, i32
  }
  func.func @transform_2(%arg0: i32, %arg1: i32) -> (i32, i32) {
    %c0_i32 = arith.constant 0 : i32
    %c0_i32_0 = arith.constant 0 : i32
    %c0_i32_1 = arith.constant 0 : i32
    return %c0_i32, %c0_i32_0 : i32, i32
  }
  func.func @transform_3(%arg0: i32, %arg1: i32) -> (i32, i32) {
    %c0_i32 = arith.constant 0 : i32
    %c0_i32_0 = arith.constant 0 : i32
    %c0_i32_1 = arith.constant 0 : i32
    return %c0_i32, %c0_i32_0 : i32, i32
  }
}

</mosaic_0001>

<llo_original>
// kernel: bottleneck_forward.3
$region0: #{bottleneck_forward.3}
  #allocation0 [shape = 'u32[]', space=smem, size = 0x4, offset = 0x4, fixed_abs, tag = 'smem constant byte address 0x4 - core index']
  #allocation1 [shape = 'u32[72,128]{1,0:T(1,128)}', space=vmem, size = 0x9000, scoped, tag = 'internal scratch']
  %s0 = inlined_call_operand.vmem [shape: f32[2,16,16], index: 0, kind: input, shape index: {}]
  %s1 = inlined_call_operand.vmem [shape: f32[32,16], index: 1, kind: input, shape index: {}]
  %s2 = inlined_call_operand.vmem [shape: f32[32,1], index: 2, kind: input, shape index: {}]
  %s3 = inlined_call_operand.vmem [shape: f32[32,1], index: 3, kind: input, shape index: {}]
  %s4 = inlined_call_operand.vmem [shape: f32[2,32,16], index: 4, kind: output, shape index: {}]
  %s5 = sld [smem:[#allocation0]]
  $region49: #{bottleneck_forward.3} parent=0
    _
  %s7 = ssub.s32 1, %s5
  %s8 = scalar_select 0, %s7, %s5
  loop: start=0, step=1, limit=4
  $region2: #{bottleneck_forward.3} parent=0 // loop_pre_header
    _
  $region3: #{bottleneck_forward.3} parent=0 // loop_header
    %s10 = sphi 0, %s14
    %p11 = scmp.ge.s32.totalorder %s10, 4
    %s17 = sphi 0, %s29
    %s18 = sphi 0, %s25
    %s19 = sphi 0, %s17
    %s20 = sphi 0, %s18
    %s21 = sphi 0, %s19
    %s22 = sphi 0, %s20
    %s34 = sphi 0, %s36
    %s37 = sphi 0, %s34
    %s38 = sphi 0, %s37
    %s54 = sphi 0, %s38
    %s58 = sphi 0, %s58
    %s60 = sphi 0, %s58
    %s61 = sphi 0, %s60
    %s75 = sphi 0, %s61
    %s79 = sphi 0, %s79
    %s81 = sphi 0, %s79
    %s82 = sphi 0, %s81
    %s96 = sphi 0, %s82
    %s100 = sphi 0, %s100
    %s102 = sphi 0, %s100
    %s103 = sphi 0, %s102
    %s117 = sphi 0, %s103
    %s125 = sphi 0, %s127
    %s128 = sphi 0, %s125
    %s129 = sphi 0, %s128
    %s145 = sphi 0, %s129
  $region4: #{bottleneck_forward.3} parent=0 // loop_header_branch
    %13 = sbr.rel (%p11) target = $region8
  $region5: #{bottleneck_forward.3} parent=0 // loop_body
    %s15 = ssub.s32 %s10, 1
    %s16 = ssub.s32 %s10, 2
    %s23 = sadd.s32 1, %s18
    %p24 = scmp.ge.s32.totalorder %s23, 1
    %s25 = scalar_select %p24, 0, %s23
    %s26 = sadd.s32 1, %s17
    %s27 = scalar_select %p24, %s26, %s17
    %p28 = scmp.ge.s32.totalorder %s27, 2
    %s29 = scalar_select %p28, 0, %s27
    %s30 = ssub.s32 %s17, %s29
    %s31 = ssub.s32 %s18, %s25
    %s32 = sor.u32 %s30, %s31
    %p33 = scmp.eq.s32.totalorder %s32, 0
    %s35 = sadd.s32 %s34, 1
    %s36 = scalar_select %p33, %s34, %s35
    %p39 = pneg %p33
    %p40 = scmp.eq.s32.totalorder %s10, 1
    %p41 = por %p39, %p40
    %p42 = scmp.ne.s32.totalorder %s34, %s37
    %p43 = scmp.eq.s32.totalorder %s10, 0
    %p44 = por %p42, %p43
    %p45 = scmp.ne.s32.totalorder %s34, %s37
    %p46 = scmp.eq.s32.totalorder %s15, 1
    %p47 = por %p45, %p46
    %p48 = scmp.ne.s32.totalorder %s37, %s38
    %p49 = scmp.eq.s32.totalorder %s15, 0
    %p50 = por %p48, %p49
    %p51 = scmp.ne.s32.totalorder %s37, %s38
    %p52 = scmp.eq.s32.totalorder %s16, 1
    %p53 = por %p51, %p52
    %p55 = scmp.ne.s32.totalorder %s38, %s54
    %p56 = scmp.eq.s32.totalorder %s16, 0
    %p57 = por %p55, %p56
    %s59 = sadd.s32 %s58, 1
    %p62 = scmp.eq.s32.totalorder %s10, 1
    %p63 = scmp.ne.s32.totalorder %s58, %s60
    %p64 = scmp.eq.s32.totalorder %s10, 0
    %p65 = por %p63, %p64
    %p66 = scmp.ne.s32.totalorder %s58, %s60
    %p67 = scmp.eq.s32.totalorder %s15, 1
    %p68 = por %p66, %p67
    %p69 = scmp.ne.s32.totalorder %s60, %s61
    %p70 = scmp.eq.s32.totalorder %s15, 0
    %p71 = por %p69, %p70
    %p72 = scmp.ne.s32.totalorder %s60, %s61
    %p73 = scmp.eq.s32.totalorder %s16, 1
    %p74 = por %p72, %p73
    %p76 = scmp.ne.s32.totalorder %s61, %s75
    %p77 = scmp.eq.s32.totalorder %s16, 0
    %p78 = por %p76, %p77
    %s80 = sadd.s32 %s79, 1
    %p83 = scmp.eq.s32.totalorder %s10, 1
    %p84 = scmp.ne.s32.totalorder %s79, %s81
    %p85 = scmp.eq.s32.totalorder %s10, 0
    %p86 = por %p84, %p85
    %p87 = scmp.ne.s32.totalorder %s79, %s81
    %p88 = scmp.eq.s32.totalorder %s15, 1
    %p89 = por %p87, %p88
    %p90 = scmp.ne.s32.totalorder %s81, %s82
    %p91 = scmp.eq.s32.totalorder %s15, 0
    %p92 = por %p90, %p91
    %p93 = scmp.ne.s32.totalorder %s81, %s82
    %p94 = scmp.eq.s32.totalorder %s16, 1
    %p95 = por %p93, %p94
    %p97 = scmp.ne.s32.totalorder %s82, %s96
    %p98 = scmp.eq.s32.totalorder %s16, 0
    %p99 = por %p97, %p98
    %s101 = sadd.s32 %s100, 1
    %p104 = scmp.eq.s32.totalorder %s10, 1
    %p105 = scmp.ne.s32.totalorder %s100, %s102
    %p106 = scmp.eq.s32.totalorder %s10, 0
    %p107 = por %p105, %p106
    %p108 = scmp.ne.s32.totalorder %s100, %s102
    %p109 = scmp.eq.s32.totalorder %s15, 1
    %p110 = por %p108, %p109
    %p111 = scmp.ne.s32.totalorder %s102, %s103
    %p112 = scmp.eq.s32.totalorder %s15, 0
    %p113 = por %p111, %p112
    %p114 = scmp.ne.s32.totalorder %s102, %s103
    %p115 = scmp.eq.s32.totalorder %s16, 1
    %p116 = por %p114, %p115
    %p118 = scmp.ne.s32.totalorder %s103, %s117
    %p119 = scmp.eq.s32.totalorder %s16, 0
    %p120 = por %p118, %p119
    %s121 = ssub.s32 %s17, %s29
    %s122 = ssub.s32 %s18, %s25
    %s123 = sor.u32 %s121, %s122
    %p124 = scmp.eq.s32.totalorder %s123, 0
    %s126 = sadd.s32 %s125, 1
    %s127 = scalar_select %p124, %s125, %s126
    %p130 = pneg %p124
    %p131 = scmp.eq.s32.totalorder %s10, 1
    %p132 = por %p130, %p131
    %p133 = scmp.ne.s32.totalorder %s125, %s128
    %p134 = scmp.eq.s32.totalorder %s10, 0
    %p135 = por %p133, %p134
    %p136 = scmp.ne.s32.totalorder %s125, %s128
    %p137 = scmp.eq.s32.totalorder %s15, 1
    %p138 = por %p136, %p137
    %p139 = scmp.ne.s32.totalorder %s128, %s129
    %p140 = scmp.eq.s32.totalorder %s15, 0
    %p141 = por %p139, %p140
    %p142 = scmp.ne.s32.totalorder %s128, %s129
    %p143 = scmp.eq.s32.totalorder %s16, 1
    %p144 = por %p142, %p143
    %p146 = scmp.ne.s32.totalorder %s129, %s145
    %p147 = scmp.eq.s32.totalorder %s16, 0
    %p148 = por %p146, %p147
    %p149 = scmp.le.s32.totalorder 1, %s10
    %p150 = scmp.lt.s32.totalorder %s10, 3
    %p151 = pnand %p149, %p150
    %p152 = pneg %p151
    // Predicated region
    $region9: #{bottleneck_forward.3} parent=5 // pred_check
      _
    $region10: #{bottleneck_forward.3} parent=5 // pred_check_branch
      %154 = sbr.rel (%p151) target = $region12
    $region11: #{bottleneck_forward.3} parent=5 // pred_region
      %s155 = ssub.s32 %s10, 1
      // Predicated region
      $region13: #{bottleneck_forward.3} parent=11 // pred_check
        %p156 = pneg %p71
      $region14: #{bottleneck_forward.3} parent=11 // pred_check_branch
        %158 = sbr.rel (%p156) target = $region16
      $region15: #{bottleneck_forward.3} parent=11 // pred_region
        _
      $region16: #{bottleneck_forward.3} parent=11 // pred_fallthru
        _
      // Predicated region
      $region17: #{bottleneck_forward.3} parent=11 // pred_check
        %p159 = pneg %p92
      $region18: #{bottleneck_forward.3} parent=11 // pred_check_branch
        %161 = sbr.rel (%p159) target = $region20
      $region19: #{bottleneck_forward.3} parent=11 // pred_region
        _
      $region20: #{bottleneck_forward.3} parent=11 // pred_fallthru
        _
      // Predicated region
      $region21: #{bottleneck_forward.3} parent=11 // pred_check
        %p162 = pneg %p113
      $region22: #{bottleneck_forward.3} parent=11 // pred_check_branch
        %164 = sbr.rel (%p162) target = $region24
      $region23: #{bottleneck_forward.3} parent=11 // pred_region
        _
      $region24: #{bottleneck_forward.3} parent=11 // pred_fallthru
        _
    $region12: #{bottleneck_forward.3} parent=5 // pred_fallthru
      _
    %p165 = scmp.lt.s32.totalorder %s10, 2
    // Predicated region
    $region25: #{bottleneck_forward.3} parent=5 // pred_check
      %p166 = pneg %p165
    $region26: #{bottleneck_forward.3} parent=5 // pred_check_branch
      %168 = sbr.rel (%p166) target = $region28
    $region27: #{bottleneck_forward.3} parent=5 // pred_region
      // Predicated region
      $region29: #{bottleneck_forward.3} parent=27 // pred_check
        %p169 = pneg %p44
      $region30: #{bottleneck_forward.3} parent=27 // pred_check_branch
        %171 = sbr.rel (%p169) target = $region32
      $region31: #{bottleneck_forward.3} parent=27 // pred_region
        %p172 = scmp.lt.s32.totalorder %s17, 1
        %s173 = scalar_select %p172, %s17, 1
        %p174 = scmp.lt.s32.totalorder %s18, 0
        %s175 = scalar_select %p174, %s18, 0
        %s176 = smul.addr %s173, 2
        %s177 = sadd.s32 %s175, %s176
        %s178 = smul.addr %s177, 8
        %s179 = scalar_lea.vmem %s0, %s178
      $region32: #{bottleneck_forward.3} parent=27 // pred_fallthru
        _
    $region28: #{bottleneck_forward.3} parent=5 // pred_fallthru
      _
    %p180 = scmp.le.s32.totalorder 1, %s10
    %p181 = scmp.lt.s32.totalorder %s10, 3
    %p182 = pnand %p180, %p181
    %p183 = pneg %p182
    // Predicated region
    $region33: #{bottleneck_forward.3} parent=5 // pred_check
      _
    $region34: #{bottleneck_forward.3} parent=5 // pred_check_branch
      %185 = sbr.rel (%p182) target = $region36
    $region35: #{bottleneck_forward.3} parent=5 // pred_region
      %s186 = ssub.s32 %s10, 1
      %p187 = scmp.lt.s32.totalorder %s19, 1
      %s188 = scalar_select %p187, %s19, 1
      %p189 = scmp.lt.s32.totalorder %s20, 0
      %s190 = scalar_select %p189, %s20, 0
      %s191 = smul.addr %s188, 2
      %s192 = sadd.s32 %s190, %s191
      %s193 = smul.addr %s192, 8
      %s194 = scalar_lea.vmem %s0, %s193
      %p195 = pneg %p50
      %p196 = pneg %p47
      %p197 = pneg %p71
      %p198 = pneg %p68
      %p199 = pneg %p92
      %p200 = pneg %p89
      %p201 = pneg %p113
      %p202 = pneg %p110
      %p203 = pneg %p141
      %p204 = pneg %p138
      %p205 = scmp.lt.s32.totalorder %s19, 1
      %s206 = scalar_select %p205, %s19, 1
      %p207 = scmp.lt.s32.totalorder %s20, 0
      %s208 = scalar_select %p207, %s20, 0
      %s209 = smul.addr %s206, 4
      %s210 = sadd.s32 %s208, %s209
      %s211 = smul.addr %s210, 8
      %s212 = scalar_lea.vmem %s4, %s211
      %p213 = scmp.lt.s32.totalorder %s19, 1
      %s214 = scalar_select %p213, %s19, 1
      %p215 = scmp.lt.s32.totalorder %s20, 0
      %s216 = scalar_select %p215, %s20, 0
      %s217 = smul.addr %s214, 2
      %s218 = sadd.s32 %s216, %s217
      %s219 = smul.addr %s218, 8
      %s220 = scalar_lea.vmem %s0, %s219
      %p221 = scmp.lt.s32.totalorder %s19, 1
      %s222 = scalar_select %p221, %s19, 1
      %p223 = scmp.lt.s32.totalorder %s20, 0
      %s224 = scalar_select %p223, %s20, 0
      %s225 = smul.addr %s222, 4
      %s226 = sadd.s32 %s224, %s225
      %s227 = smul.addr %s226, 8
      %s228 = scalar_lea.vmem %s4, %s227
      %v229 = vld [vmem:[%s220] sm:$0xff]
      %v230 = vld [vmem:[%s220 + $0x8] sm:$0xff]
      %v231 = vld [vmem:[%s1] sm:$0xff]
      %v232 = vld [vmem:[%s1 + $0x8] sm:$0xff]
      %v233 = vld [vmem:[%s1 + $0x10] sm:$0xff]
      %v234 = vld [vmem:[%s1 + $0x18] sm:$0xff]
      %vm235 = vcmask 130048
      %v237 = vsel %vm235, %v231, 0
      %v240 = vsel %vm235, %v232, 0
      %v243 = vsel %vm235, %v233, 0
      %v246 = vsel %vm235, %v234, 0
      %248 = vmatpush.msra.mxu0 0.0
      %249 = vmatpush.msra.mxu0 0.0
      %250 = vmatpush.msra.mxu0 0.0
      %251 = vmatpush.msra.mxu0 0.0
      %252 = vmatpush.msra.mxu0 0.0
      %253 = vmatpush.msra.mxu0 0.0
      %254 = vmatpush.msra.mxu0 0.0
      %255 = vmatpush.msra.mxu0 0.0
      %256 = vmatpush.msra.mxu0 0.0
      %257 = vmatpush.msra.mxu0 0.0
      %258 = vmatpush.msra.mxu0 0.0
      %259 = vmatpush.msra.mxu0 0.0
      %260 = vmatpush.msra.mxu0 0.0
      %261 = vmatpush.msra.mxu0 0.0
      %262 = vmatpush.msra.mxu0 %v230
      %263 = vmatpush.msra.mxu0 %v229
      %264 = vmatmul.f32.gmra.mxu0 %v237
      %v265 = vpop.f32.mrf.mxu0
      %v266 = vadd.f32 0.0, %v265
      %267 = vmatmul.f32.gmra.mxu0 %v240
      %v268 = vpop.f32.mrf.mxu0
      %v269 = vadd.f32 0.0, %v268
      %270 = vmatmul.f32.gmra.mxu0 %v243
      %v271 = vpop.f32.mrf.mxu0
      %v272 = vadd.f32 0.0, %v271
      %273 = vmatmul.f32.gmra.mxu0 %v246
      %v274 = vpop.f32.mrf.mxu0
      %v275 = vadd.f32 0.0, %v274
      %276 = vdwg.mxu0
      %v277 = vld [vmem:[%s2] sm:$0xff]
      %v278 = vld [vmem:[%s2 + $0x8] sm:$0xff]
      %v279 = vld [vmem:[%s2 + $0x10] sm:$0xff]
      %v280 = vld [vmem:[%s2 + $0x18] sm:$0xff]
      %282 = vset.pattern.permute.xlu0 0
      %283 = vperm.xlu0 %282, %v277
      %v284 = vpop.permute.xlu0 %283
      %287 = vset.pattern.permute.xlu0 0
      %288 = vperm.xlu0 %287, %v278
      %v289 = vpop.permute.xlu0 %288
      %292 = vset.pattern.permute.xlu0 0
      %293 = vperm.xlu0 %292, %v279
      %v294 = vpop.permute.xlu0 %293
      %297 = vset.pattern.permute.xlu0 0
      %298 = vperm.xlu0 %297, %v280
      %v299 = vpop.permute.xlu0 %298
      %v301 = vmul.f32 %v266, %v284
      %v302 = vmul.f32 %v269, %v289
      %v303 = vmul.f32 %v272, %v294
      %v304 = vmul.f32 %v275, %v299
      %v305 = vld [vmem:[%s3] sm:$0xff]
      %v306 = vld [vmem:[%s3 + $0x8] sm:$0xff]
      %v307 = vld [vmem:[%s3 + $0x10] sm:$0xff]
      %v308 = vld [vmem:[%s3 + $0x18] sm:$0xff]
      %310 = vset.pattern.permute.xlu0 0
      %311 = vperm.xlu0 %310, %v305
      %v312 = vpop.permute.xlu0 %311
      %315 = vset.pattern.permute.xlu0 0
      %316 = vperm.xlu0 %315, %v306
      %v317 = vpop.permute.xlu0 %316
      %320 = vset.pattern.permute.xlu0 0
      %321 = vperm.xlu0 %320, %v307
      %v322 = vpop.permute.xlu0 %321
      %325 = vset.pattern.permute.xlu0 0
      %326 = vperm.xlu0 %325, %v308
      %v327 = vpop.permute.xlu0 %326
      %v329 = vadd.f32 %v301, %v312
      %v330 = vadd.f32 %v302, %v317
      %v331 = vadd.f32 %v303, %v322
      %v332 = vadd.f32 %v304, %v327
      %v333 = vmax.f32 %v329, 0.0
      %v334 = vmax.f32 %v330, 0.0
      %v335 = vmax.f32 %v331, 0.0
      %v336 = vmax.f32 %v332, 0.0
      %337 = vst.msk [vmem:[%s228] sm:$0xff] %vm235, %v333
      %338 = vst.msk [vmem:[%s228 + $0x8] sm:$0xff] %vm235, %v334
      %339 = vst.msk [vmem:[%s228 + $0x10] sm:$0xff] %vm235, %v335
      %340 = vst.msk [vmem:[%s228 + $0x18] sm:$0xff] %vm235, %v336
      %p341 = scmp.lt.s32.totalorder %s19, 1
      %s342 = scalar_select %p341, %s19, 1
      %p343 = scmp.lt.s32.totalorder %s20, 0
      %s344 = scalar_select %p343, %s20, 0
      %s345 = smul.addr %s342, 4
      %s346 = sadd.s32 %s344, %s345
      %s347 = smul.addr %s346, 8
      %s348 = scalar_lea.vmem %s4, %s347
      // Predicated region
      $region37: #{bottleneck_forward.3} parent=35 // pred_check
        %p349 = pneg %p138
      $region38: #{bottleneck_forward.3} parent=35 // pred_check_branch
        %351 = sbr.rel (%p349) target = $region40
      $region39: #{bottleneck_forward.3} parent=35 // pred_region
        _
      $region40: #{bottleneck_forward.3} parent=35 // pred_fallthru
        _
    $region36: #{bottleneck_forward.3} parent=5 // pred_fallthru
      _
    %p352 = scmp.le.s32.totalorder 2, %s10
    // Predicated region
    $region41: #{bottleneck_forward.3} parent=5 // pred_check
      %p353 = pneg %p352
    $region42: #{bottleneck_forward.3} parent=5 // pred_check_branch
      %355 = sbr.rel (%p353) target = $region44
    $region43: #{bottleneck_forward.3} parent=5 // pred_region
      %s356 = ssub.s32 %s10, 2
      // Predicated region
      $region45: #{bottleneck_forward.3} parent=43 // pred_check
        %p357 = pneg %p144
      $region46: #{bottleneck_forward.3} parent=43 // pred_check_branch
        %359 = sbr.rel (%p357) target = $region48
      $region47: #{bottleneck_forward.3} parent=43 // pred_region
        %p360 = scmp.lt.s32.totalorder %s21, 1
        %s361 = scalar_select %p360, %s21, 1
        %p362 = scmp.lt.s32.totalorder %s22, 0
        %s363 = scalar_select %p362, %s22, 0
        %s364 = smul.addr %s361, 4
        %s365 = sadd.s32 %s363, %s364
        %s366 = smul.addr %s365, 8
        %s367 = scalar_lea.vmem %s4, %s366
      $region48: #{bottleneck_forward.3} parent=43 // pred_fallthru
        _
    $region44: #{bottleneck_forward.3} parent=5 // pred_fallthru
      _
  $region6: #{bottleneck_forward.3} parent=0 // loop_footer
    %s14 = sadd.s32 1, %s10
  $region7: #{bottleneck_forward.3} parent=0 // loop_footer_branch
    %9 = sbr.rel target = $region3
  $region8: #{bottleneck_forward.3} parent=0 // loop_exit
    _

// kernel: bottleneck_forward.2
$region0: #{bottleneck_forward.2}
  #allocation0 [shape = 'u32[]', space=smem, size = 0x4, offset = 0x4, fixed_abs, tag = 'smem constant byte address 0x4 - core index']
  #allocation1 [shape = 'u32[72,128]{1,0:T(1,128)}', space=vmem, size = 0x9000, scoped, tag = 'internal scratch']
  %s0 = inlined_call_operand.vmem [shape: f32[2,16,16], index: 0, kind: input, shape index: {}]
  %s1 = inlined_call_operand.vmem [shape: f32[32,16], index: 1, kind: input, shape index: {}]
  %s2 = inlined_call_operand.vmem [shape: f32[32,1], index: 2, kind: output, shape index: {0}]
  %s3 = inlined_call_operand.vmem [shape: f32[32,1], index: 3, kind: output, shape index: {1}]
  %4 = xla_tuple %s2, %s3
  %s5 = sld [smem:[#allocation0]]
  $region53: #{bottleneck_forward.2} parent=0
    _
  %s7 = ssub.s32 1, %s5
  %s8 = scalar_select 0, %s7, %s5
  loop: start=0, step=1, limit=4
  $region2: #{bottleneck_forward.2} parent=0 // loop_pre_header
    _
  $region3: #{bottleneck_forward.2} parent=0 // loop_header
    %s10 = sphi 0, %s14
    %p11 = scmp.ge.s32.totalorder %s10, 4
    %s17 = sphi 0, %s29
    %s18 = sphi 0, %s25
    %s19 = sphi 0, %s17
    %s20 = sphi 0, %s18
    %s21 = sphi 0, %s19
    %s22 = sphi 0, %s20
    %s34 = sphi 0, %s36
    %s37 = sphi 0, %s34
    %s38 = sphi 0, %s37
    %s54 = sphi 0, %s38
    %s58 = sphi 0, %s58
    %s60 = sphi 0, %s58
    %s61 = sphi 0, %s60
    %s75 = sphi 0, %s61
    %s79 = sphi 0, %s79
    %s81 = sphi 0, %s79
    %s82 = sphi 0, %s81
    %s96 = sphi 0, %s82
    %s100 = sphi 0, %s100
    %s102 = sphi 0, %s100
    %s103 = sphi 0, %s102
    %s117 = sphi 0, %s103
  $region4: #{bottleneck_forward.2} parent=0 // loop_header_branch
    %13 = sbr.rel (%p11) target = $region8
  $region5: #{bottleneck_forward.2} parent=0 // loop_body
    %s15 = ssub.s32 %s10, 1
    %s16 = ssub.s32 %s10, 2
    %s23 = sadd.s32 1, %s18
    %p24 = scmp.ge.s32.totalorder %s23, 1
    %s25 = scalar_select %p24, 0, %s23
    %s26 = sadd.s32 1, %s17
    %s27 = scalar_select %p24, %s26, %s17
    %p28 = scmp.ge.s32.totalorder %s27, 2
    %s29 = scalar_select %p28, 0, %s27
    %s30 = ssub.s32 %s17, %s29
    %s31 = ssub.s32 %s18, %s25
    %s32 = sor.u32 %s30, %s31
    %p33 = scmp.eq.s32.totalorder %s32, 0
    %s35 = sadd.s32 %s34, 1
    %s36 = scalar_select %p33, %s34, %s35
    %p39 = pneg %p33
    %p40 = scmp.eq.s32.totalorder %s10, 1
    %p41 = por %p39, %p40
    %p42 = scmp.ne.s32.totalorder %s34, %s37
    %p43 = scmp.eq.s32.totalorder %s10, 0
    %p44 = por %p42, %p43
    %p45 = scmp.ne.s32.totalorder %s34, %s37
    %p46 = scmp.eq.s32.totalorder %s15, 1
    %p47 = por %p45, %p46
    %p48 = scmp.ne.s32.totalorder %s37, %s38
    %p49 = scmp.eq.s32.totalorder %s15, 0
    %p50 = por %p48, %p49
    %p51 = scmp.ne.s32.totalorder %s37, %s38
    %p52 = scmp.eq.s32.totalorder %s16, 1
    %p53 = por %p51, %p52
    %p55 = scmp.ne.s32.totalorder %s38, %s54
    %p56 = scmp.eq.s32.totalorder %s16, 0
    %p57 = por %p55, %p56
    %s59 = sadd.s32 %s58, 1
    %p62 = scmp.eq.s32.totalorder %s10, 1
    %p63 = scmp.ne.s32.totalorder %s58, %s60
    %p64 = scmp.eq.s32.totalorder %s10, 0
    %p65 = por %p63, %p64
    %p66 = scmp.ne.s32.totalorder %s58, %s60
    %p67 = scmp.eq.s32.totalorder %s15, 1
    %p68 = por %p66, %p67
    %p69 = scmp.ne.s32.totalorder %s60, %s61
    %p70 = scmp.eq.s32.totalorder %s15, 0
    %p71 = por %p69, %p70
    %p72 = scmp.ne.s32.totalorder %s60, %s61
    %p73 = scmp.eq.s32.totalorder %s16, 1
    %p74 = por %p72, %p73
    %p76 = scmp.ne.s32.totalorder %s61, %s75
    %p77 = scmp.eq.s32.totalorder %s16, 0
    %p78 = por %p76, %p77
    %s80 = sadd.s32 %s79, 1
    %p83 = scmp.eq.s32.totalorder %s10, 1
    %p84 = scmp.ne.s32.totalorder %s79, %s81
    %p85 = scmp.eq.s32.totalorder %s10, 0
    %p86 = por %p84, %p85
    %p87 = scmp.ne.s32.totalorder %s79, %s81
    %p88 = scmp.eq.s32.totalorder %s15, 1
    %p89 = por %p87, %p88
    %p90 = scmp.ne.s32.totalorder %s81, %s82
    %p91 = scmp.eq.s32.totalorder %s15, 0
    %p92 = por %p90, %p91
    %p93 = scmp.ne.s32.totalorder %s81, %s82
    %p94 = scmp.eq.s32.totalorder %s16, 1
    %p95 = por %p93, %p94
    %p97 = scmp.ne.s32.totalorder %s82, %s96
    %p98 = scmp.eq.s32.totalorder %s16, 0
    %p99 = por %p97, %p98
    %s101 = sadd.s32 %s100, 1
    %p104 = scmp.eq.s32.totalorder %s10, 1
    %p105 = scmp.ne.s32.totalorder %s100, %s102
    %p106 = scmp.eq.s32.totalorder %s10, 0
    %p107 = por %p105, %p106
    %p108 = scmp.ne.s32.totalorder %s100, %s102
    %p109 = scmp.eq.s32.totalorder %s15, 1
    %p110 = por %p108, %p109
    %p111 = scmp.ne.s32.totalorder %s102, %s103
    %p112 = scmp.eq.s32.totalorder %s15, 0
    %p113 = por %p111, %p112
    %p114 = scmp.ne.s32.totalorder %s102, %s103
    %p115 = scmp.eq.s32.totalorder %s16, 1
    %p116 = por %p114, %p115
    %p118 = scmp.ne.s32.totalorder %s103, %s117
    %p119 = scmp.eq.s32.totalorder %s16, 0
    %p120 = por %p118, %p119
    %p121 = scmp.le.s32.totalorder 1, %s10
    %p122 = scmp.lt.s32.totalorder %s10, 3
    %p123 = pnand %p121, %p122
    %p124 = pneg %p123
    // Predicated region
    $region9: #{bottleneck_forward.2} parent=5 // pred_check
      _
    $region10: #{bottleneck_forward.2} parent=5 // pred_check_branch
      %126 = sbr.rel (%p123) target = $region12
    $region11: #{bottleneck_forward.2} parent=5 // pred_region
      %s127 = ssub.s32 %s10, 1
      // Predicated region
      $region13: #{bottleneck_forward.2} parent=11 // pred_check
        %p128 = pneg %p71
      $region14: #{bottleneck_forward.2} parent=11 // pred_check_branch
        %130 = sbr.rel (%p128) target = $region16
      $region15: #{bottleneck_forward.2} parent=11 // pred_region
        _
      $region16: #{bottleneck_forward.2} parent=11 // pred_fallthru
        _
    $region12: #{bottleneck_forward.2} parent=5 // pred_fallthru
      _
    %p131 = scmp.lt.s32.totalorder %s10, 2
    // Predicated region
    $region17: #{bottleneck_forward.2} parent=5 // pred_check
      %p132 = pneg %p131
    $region18: #{bottleneck_forward.2} parent=5 // pred_check_branch
      %134 = sbr.rel (%p132) target = $region20
    $region19: #{bottleneck_forward.2} parent=5 // pred_region
      // Predicated region
      $region21: #{bottleneck_forward.2} parent=19 // pred_check
        %p135 = pneg %p44
      $region22: #{bottleneck_forward.2} parent=19 // pred_check_branch
        %137 = sbr.rel (%p135) target = $region24
      $region23: #{bottleneck_forward.2} parent=19 // pred_region
        %p138 = scmp.lt.s32.totalorder %s17, 1
        %s139 = scalar_select %p138, %s17, 1
        %p140 = scmp.lt.s32.totalorder %s18, 0
        %s141 = scalar_select %p140, %s18, 0
        %s142 = smul.addr %s139, 2
        %s143 = sadd.s32 %s141, %s142
        %s144 = smul.addr %s143, 8
        %s145 = scalar_lea.vmem %s0, %s144
      $region24: #{bottleneck_forward.2} parent=19 // pred_fallthru
        _
    $region20: #{bottleneck_forward.2} parent=5 // pred_fallthru
      _
    %p146 = scmp.le.s32.totalorder 1, %s10
    %p147 = scmp.lt.s32.totalorder %s10, 3
    %p148 = pnand %p146, %p147
    %p149 = pneg %p148
    // Predicated region
    $region25: #{bottleneck_forward.2} parent=5 // pred_check
      _
    $region26: #{bottleneck_forward.2} parent=5 // pred_check_branch
      %151 = sbr.rel (%p148) target = $region28
    $region27: #{bottleneck_forward.2} parent=5 // pred_region
      %s152 = ssub.s32 %s10, 1
      %p153 = scmp.lt.s32.totalorder %s19, 1
      %s154 = scalar_select %p153, %s19, 1
      %p155 = scmp.lt.s32.totalorder %s20, 0
      %s156 = scalar_select %p155, %s20, 0
      %s157 = smul.addr %s154, 2
      %s158 = sadd.s32 %s156, %s157
      %s159 = smul.addr %s158, 8
      %s160 = scalar_lea.vmem %s0, %s159
      %p161 = pneg %p50
      %p162 = pneg %p47
      %p163 = pneg %p71
      %p164 = pneg %p68
      %p165 = pneg %p92
      %p166 = pneg %p89
      %p167 = pneg %p113
      %p168 = pneg %p110
      %p169 = scmp.lt.s32.totalorder %s19, 1
      %s170 = scalar_select %p169, %s19, 1
      %p171 = scmp.lt.s32.totalorder %s20, 0
      %s172 = scalar_select %p171, %s20, 0
      %s173 = smul.addr %s170, 2
      %s174 = sadd.s32 %s172, %s173
      %s175 = smul.addr %s174, 8
      %s176 = scalar_lea.vmem %s0, %s175
      %p177 = scmp.eq.s32.totalorder %s19, 0
      %p178 = scmp.eq.s32.totalorder %s20, 0
      %p179 = pnand %p177, %p178
      %p180 = pneg %p179
      // Predicated region
      $region29: #{bottleneck_forward.2} parent=27 // pred_check
        _
      $region30: #{bottleneck_forward.2} parent=27 // pred_check_branch
        %182 = sbr.rel (%p179) target = $region32
      $region31: #{bottleneck_forward.2} parent=27 // pred_region
        %vm183 = vcmask 7168
        %184 = vst.msk [vmem:[%s2] sm:$0xff] %vm183, 0.0
        %185 = vst.msk [vmem:[%s2 + $0x8] sm:$0xff] %vm183, 0.0
        %186 = vst.msk [vmem:[%s2 + $0x10] sm:$0xff] %vm183, 0.0
        %187 = vst.msk [vmem:[%s2 + $0x18] sm:$0xff] %vm183, 0.0
        %188 = vst.msk [vmem:[%s3] sm:$0xff] %vm183, 0.0
        %189 = vst.msk [vmem:[%s3 + $0x8] sm:$0xff] %vm183, 0.0
        %190 = vst.msk [vmem:[%s3 + $0x10] sm:$0xff] %vm183, 0.0
        %191 = vst.msk [vmem:[%s3 + $0x18] sm:$0xff] %vm183, 0.0
      $region32: #{bottleneck_forward.2} parent=27 // pred_fallthru
        _
      %v192 = vld [vmem:[%s176] sm:$0xff]
      %v193 = vld [vmem:[%s176 + $0x8] sm:$0xff]
      %v194 = vld [vmem:[%s1] sm:$0xff]
      %v195 = vld [vmem:[%s1 + $0x8] sm:$0xff]
      %v196 = vld [vmem:[%s1 + $0x10] sm:$0xff]
      %v197 = vld [vmem:[%s1 + $0x18] sm:$0xff]
      %vm198 = vcmask 130048
      %v200 = vsel %vm198, %v194, 0
      %v203 = vsel %vm198, %v195, 0
      %v206 = vsel %vm198, %v196, 0
      %v209 = vsel %vm198, %v197, 0
      %211 = vmatpush.msra.mxu0 0.0
      %212 = vmatpush.msra.mxu0 0.0
      %213 = vmatpush.msra.mxu0 0.0
      %214 = vmatpush.msra.mxu0 0.0
      %215 = vmatpush.msra.mxu0 0.0
      %216 = vmatpush.msra.mxu0 0.0
      %217 = vmatpush.msra.mxu0 0.0
      %218 = vmatpush.msra.mxu0 0.0
      %219 = vmatpush.msra.mxu0 0.0
      %220 = vmatpush.msra.mxu0 0.0
      %221 = vmatpush.msra.mxu0 0.0
      %222 = vmatpush.msra.mxu0 0.0
      %223 = vmatpush.msra.mxu0 0.0
      %224 = vmatpush.msra.mxu0 0.0
      %225 = vmatpush.msra.mxu0 %v193
      %226 = vmatpush.msra.mxu0 %v192
      %227 = vmatmul.f32.gmra.mxu0 %v200
      %v228 = vpop.f32.mrf.mxu0
      %v229 = vadd.f32 0.0, %v228
      %230 = vmatmul.f32.gmra.mxu0 %v203
      %v231 = vpop.f32.mrf.mxu0
      %v232 = vadd.f32 0.0, %v231
      %233 = vmatmul.f32.gmra.mxu0 %v206
      %v234 = vpop.f32.mrf.mxu0
      %v235 = vadd.f32 0.0, %v234
      %236 = vmatmul.f32.gmra.mxu0 %v209
      %v237 = vpop.f32.mrf.mxu0
      %v238 = vadd.f32 0.0, %v237
      %239 = vdwg.mxu0
      %s240 = smul.u32 %s20, 16
      %s241 = ssub.s32 16, %s240
      %v242 = vlaneseq
      %v243 = vand.u32 %v242, 127
      %v244 = vstv %s241
      %vm245 = vcmp.lt.s32.totalorder %v243, %v244
      %v246 = vsel %vm245, 1, 0
      %vm247 = vcmp.eq.s32.totalorder %v246, 1
      %v248 = vsel %vm247, %v229, 0.0
      %v249 = vsel %vm247, %v232, 0.0
      %v250 = vsel %vm247, %v235, 0.0
      %v251 = vsel %vm247, %v238, 0.0
      %v252 = vld [vmem:[%s2] sm:$0xff]
      %v253 = vld [vmem:[%s2 + $0x8] sm:$0xff]
      %v254 = vld [vmem:[%s2 + $0x10] sm:$0xff]
      %v255 = vld [vmem:[%s2 + $0x18] sm:$0xff]
      %v256 = vsel %vm198, %v248, 0.0
      %257 = vadd.xlane.f32.xlu0 %v256
      %v258 = vpop.xlane.xlu0 %257
      %v259 = vsel %vm198, %v249, 0.0
      %260 = vadd.xlane.f32.xlu0 %v259
      %v261 = vpop.xlane.xlu0 %260
      %v262 = vsel %vm198, %v250, 0.0
      %263 = vadd.xlane.f32.xlu0 %v262
      %v264 = vpop.xlane.xlu0 %263
      %v265 = vsel %vm198, %v251, 0.0
      %266 = vadd.xlane.f32.xlu0 %v265
      %v267 = vpop.xlane.xlu0 %266
      %v268 = vadd.f32 %v252, %v258
      %v269 = vadd.f32 %v253, %v261
      %v270 = vadd.f32 %v254, %v264
      %v271 = vadd.f32 %v255, %v267
      %vm272 = vcmask 7168
      %273 = vst.msk [vmem:[%s2] sm:$0xff] %vm272, %v268
      %274 = vst.msk [vmem:[%s2 + $0x8] sm:$0xff] %vm272, %v269
      %275 = vst.msk [vmem:[%s2 + $0x10] sm:$0xff] %vm272, %v270
      %276 = vst.msk [vmem:[%s2 + $0x18] sm:$0xff] %vm272, %v271
      %v277 = vld [vmem:[%s3] sm:$0xff]
      %v278 = vld [vmem:[%s3 + $0x8] sm:$0xff]
      %v279 = vld [vmem:[%s3 + $0x10] sm:$0xff]
      %v280 = vld [vmem:[%s3 + $0x18] sm:$0xff]
      %v281 = vmul.f32 %v248, %v248
      %v282 = vmul.f32 %v249, %v249
      %v283 = vmul.f32 %v250, %v250
      %v284 = vmul.f32 %v251, %v251
      %v285 = vsel %vm198, %v281, 0.0
      %286 = vadd.xlane.f32.xlu0 %v285
      %v287 = vpop.xlane.xlu0 %286
      %v288 = vsel %vm198, %v282, 0.0
      %289 = vadd.xlane.f32.xlu0 %v288
      %v290 = vpop.xlane.xlu0 %289
      %v291 = vsel %vm198, %v283, 0.0
      %292 = vadd.xlane.f32.xlu0 %v291
      %v293 = vpop.xlane.xlu0 %292
      %v294 = vsel %vm198, %v284, 0.0
      %295 = vadd.xlane.f32.xlu0 %v294
      %v296 = vpop.xlane.xlu0 %295
      %v297 = vadd.f32 %v277, %v287
      %v298 = vadd.f32 %v278, %v290
      %v299 = vadd.f32 %v279, %v293
      %v300 = vadd.f32 %v280, %v296
      %301 = vst.msk [vmem:[%s3] sm:$0xff] %vm272, %v297
      %302 = vst.msk [vmem:[%s3 + $0x8] sm:$0xff] %vm272, %v298
      %303 = vst.msk [vmem:[%s3 + $0x10] sm:$0xff] %vm272, %v299
      %304 = vst.msk [vmem:[%s3 + $0x18] sm:$0xff] %vm272, %v300
      // Predicated region
      $region33: #{bottleneck_forward.2} parent=27 // pred_check
        %p305 = pneg %p89
      $region34: #{bottleneck_forward.2} parent=27 // pred_check_branch
        %307 = sbr.rel (%p305) target = $region36
      $region35: #{bottleneck_forward.2} parent=27 // pred_region
        _
      $region36: #{bottleneck_forward.2} parent=27 // pred_fallthru
        _
      // Predicated region
      $region37: #{bottleneck_forward.2} parent=27 // pred_check
        %p308 = pneg %p110
      $region38: #{bottleneck_forward.2} parent=27 // pred_check_branch
        %310 = sbr.rel (%p308) target = $region40
      $region39: #{bottleneck_forward.2} parent=27 // pred_region
        _
      $region40: #{bottleneck_forward.2} parent=27 // pred_fallthru
        _
      // Predicated region
      $region41: #{bottleneck_forward.2} parent=27 // pred_check
        %p311 = pneg %p89
      $region42: #{bottleneck_forward.2} parent=27 // pred_check_branch
        %313 = sbr.rel (%p311) target = $region44
      $region43: #{bottleneck_forward.2} parent=27 // pred_region
        _
      $region44: #{bottleneck_forward.2} parent=27 // pred_fallthru
        _
      // Predicated region
      $region45: #{bottleneck_forward.2} parent=27 // pred_check
        %p314 = pneg %p110
      $region46: #{bottleneck_forward.2} parent=27 // pred_check_branch
        %316 = sbr.rel (%p314) target = $region48
      $region47: #{bottleneck_forward.2} parent=27 // pred_region
        _
      $region48: #{bottleneck_forward.2} parent=27 // pred_fallthru
        _
    $region28: #{bottleneck_forward.2} parent=5 // pred_fallthru
      _
    %p317 = scmp.le.s32.totalorder 2, %s10
    // Predicated region
    $region49: #{bottleneck_forward.2} parent=5 // pred_check
      %p318 = pneg %p317
    $region50: #{bottleneck_forward.2} parent=5 // pred_check_branch
      %320 = sbr.rel (%p318) target = $region52
    $region51: #{bottleneck_forward.2} parent=5 // pred_region
      %s321 = ssub.s32 %s10, 2
    $region52: #{bottleneck_forward.2} parent=5 // pred_fallthru
      _
  $region6: #{bottleneck_forward.2} parent=0 // loop_footer
    %s14 = sadd.s32 1, %s10
  $region7: #{bottleneck_forward.2} parent=0 // loop_footer_branch
    %9 = sbr.rel target = $region3
  $region8: #{bottleneck_forward.2} parent=0 // loop_exit
    _

</llo_original>
